<compile_context>
chip_gen: v5e
topology: v5e:2x2
jax: 0.10.0
libtpu: 0.0.40
codegen_flags: <defaults>
</compile_context>

<pallas_src>
import functools

import jax
import jax.numpy as jnp
from jax.experimental import pallas as pl
from jax.experimental.pallas import tpu as pltpu

_H1 = 128
_H2 = 256
_OUT_PAD = 128        # lane-dense padded logits width (multiple of 128)
_NEG_INF = -1e30      # bias on padded action lanes -> softmax prob underflows to 0
_TM_MAX = 2048        # max batch tile (VMEM-safe on v5e/v6e/v7x)


def _actor_kernel(x_ref, w1_ref, b1_ref, w2_ref, b2_ref, w3_ref, b3_ref,
                  out_ref):
    # layer 1: (TM, S) @ (S, 128); f32 MXU accumulation, bias+ReLU in f32
    h1 = jnp.dot(x_ref[...], w1_ref[...], preferred_element_type=jnp.float32)
    h1 = jnp.maximum(h1 + b1_ref[...], 0.0)
    # layer 2: (TM, 128) @ (128, 256)
    h2 = jnp.dot(h1.astype(w2_ref.dtype), w2_ref[...],
                 preferred_element_type=jnp.float32)
    h2 = jnp.maximum(h2 + b2_ref[...], 0.0)
    # layer 3 into lane-dense padded logits; padded lanes carry -1e30 bias
    logits = jnp.dot(h2.astype(w3_ref.dtype), w3_ref[...],
                     preferred_element_type=jnp.float32)
    logits = logits + b3_ref[...]
    # softmax over the padded lane axis (padded lanes contribute exactly 0);
    # reciprocal on the EUP + multiply instead of a VALU divide.
    m = jnp.max(logits, axis=-1, keepdims=True)
    e = jnp.exp(logits - m)
    inv = pl.reciprocal(jnp.sum(e, axis=-1, keepdims=True), approx=False)
    out_ref[...] = (e * inv).astype(out_ref.dtype)


def _round_up(x, m):
    return (x + m - 1) // m * m


def _pick_tm(batch):
    """Batch tile: multiple of 16; single tile for tiny batches; otherwise
    >= 2 grid steps (v7x two-TC sharding) with tiles capped at _TM_MAX and the
    step count chosen to minimize padded rows."""
    b16 = _round_up(max(batch, 8), 16)
    if b16 <= 256:
        return b16                              # grid=(1,): launch-bound regime
    n_steps = max(2, pl.cdiv(b16, _TM_MAX))     # both TCs busy, big tiles
    return _round_up(pl.cdiv(b16, n_steps), 16)


def prepare_actor_params(w1, b1, w2, b2, w3, b3, action_size,
                         compute_dtype=jnp.bfloat16):
    """One-time weight prep (do NOT call per forward step):
       - pad the action head to 128 lanes (lane-dense output stores),
       - -1e30 bias on padded lanes so their softmax prob is exactly 0,
       - cast weights to bf16 (half the DMA, full-rate MXU); biases stay f32."""
    assert action_size <= _OUT_PAD
    w1c = w1.astype(compute_dtype)
    w2c = w2.astype(compute_dtype)
    w3c = jnp.zeros((_H2, _OUT_PAD), compute_dtype)
    w3c = w3c.at[:, :action_size].set(w3.astype(compute_dtype))
    b1c = jnp.reshape(b1, (1, _H1)).astype(jnp.float32)
    b2c = jnp.reshape(b2, (1, _H2)).astype(jnp.float32)
    b3c = jnp.full((1, _OUT_PAD), _NEG_INF, jnp.float32)
    b3c = b3c.at[:, :action_size].set(jnp.reshape(b3, (1, -1)).astype(jnp.float32))
    return (w1c, b1c, w2c, b2c, w3c, b3c)


@functools.partial(jax.jit, static_argnames=("action_size", "tm", "out_dtype"))
def actor_forward(state, params, *, action_size, tm=None,
                  out_dtype=jnp.float32):
    """state: (B, state_size) f32; params from prepare_actor_params.
    Returns softmax probabilities (B, action_size) in out_dtype."""
    w1c, b1c, w2c, b2c, w3c, b3c = params
    B, S = state.shape
    compute_dtype = w1c.dtype

    if tm is None:
        tm = _pick_tm(B)
    b_pad = _round_up(max(B, tm), tm)

    # only cast the state per call; pad only when necessary (no extra copy in
    # the common case where B is already a tile multiple).
    xc = state.astype(compute_dtype)
    if b_pad != B:
        xc = jnp.pad(xc, ((0, b_pad - B), (0, 0)))

    param_bytes = sum(int(p.size) * p.dtype.itemsize for p in params)
    cost = pl.CostEstimate(
        flops=2 * b_pad * (S * _H1 + _H1 * _H2 + _H2 * _OUT_PAD),
        transcendentals=b_pad * (_OUT_PAD + 1),          # exp + reciprocal
        bytes_accessed=(b_pad * S * jnp.dtype(compute_dtype).itemsize
                        + param_bytes
                        + b_pad * _OUT_PAD * jnp.dtype(out_dtype).itemsize),
    )

    probs = pl.pallas_call(
        _actor_kernel,
        out_shape=jax.ShapeDtypeStruct((b_pad, _OUT_PAD), out_dtype),
        grid=(b_pad // tm,),
        in_specs=[
            pl.BlockSpec((tm, S), lambda i: (i, 0)),           # state: batch-tiled
            pl.BlockSpec((S, _H1), lambda i: (0, 0)),          # weights: VMEM-resident
            pl.BlockSpec((1, _H1), lambda i: (0, 0)),
            pl.BlockSpec((_H1, _H2), lambda i: (0, 0)),
            pl.BlockSpec((1, _H2), lambda i: (0, 0)),
            pl.BlockSpec((_H2, _OUT_PAD), lambda i: (0, 0)),
            pl.BlockSpec((1, _OUT_PAD), lambda i: (0, 0)),
        ],
        out_specs=pl.BlockSpec((tm, _OUT_PAD), lambda i: (i, 0)),
        compiler_params=pltpu.CompilerParams(
            dimension_semantics=("parallel",)),  # batch tiles across TCs on v7x
        cost_estimate=cost,
    )(xc, w1c, b1c, w2c, b2c, w3c, b3c)

    # TODO(synk): torch.distributions.Categorical wrapper (sampling / log_prob)
    # has no Pallas equivalent; the kernel returns the softmax probabilities.
    return probs[:B, :action_size]


def _init_linear(key, fan_in, fan_out):
    """Mimics PyTorch nn.Linear default init (uniform +-1/sqrt(fan_in)).
    Returns (W, b) with W shaped (fan_in, fan_out) so x @ W == F.linear(x, W_pt)."""
    kw, kb = jax.random.split(key)
    bound = 1.0 / jnp.sqrt(jnp.float32(fan_in))
    w = jax.random.uniform(kw, (fan_in, fan_out), jnp.float32, -bound, bound)
    b = jax.random.uniform(kb, (1, fan_out), jnp.float32, -bound, bound)
    return w, b


def _reference(state, w1, b1, w2, b2, w3, b3, compute_dtype):
    """Plain-JAX reference with identical bf16 casting + f32 accumulation."""
    cd = compute_dtype
    h1 = jnp.maximum(jnp.dot(state.astype(cd), w1.astype(cd),
                             preferred_element_type=jnp.float32) + b1, 0.0)
    h2 = jnp.maximum(jnp.dot(h1.astype(cd), w2.astype(cd),
                             preferred_element_type=jnp.float32) + b2, 0.0)
    logits = jnp.dot(h2.astype(cd), w3.astype(cd),
                     preferred_element_type=jnp.float32) + b3
    return jax.nn.softmax(logits, axis=-1)


if __name__ == "__main__":
    state_size = 32
    action_size = 4
    batch = 8

    key = jax.random.PRNGKey(0)
    k_in, k1, k2, k3 = jax.random.split(key, 4)

    state = jax.random.normal(k_in, (batch, state_size), jnp.float32)
    w1, b1 = _init_linear(k1, state_size, _H1)
    w2, b2 = _init_linear(k2, _H1, _H2)
    w3, b3 = _init_linear(k3, _H2, action_size)

    # one-time weight prep (padding + bf16 cast) hoisted out of the call path
    params = prepare_actor_params(w1, b1, w2, b2, w3, b3, action_size)
    params = jax.block_until_ready(params)

    probs = actor_forward(state, params, action_size=action_size)
    probs = jax.block_until_ready(probs)

    ref = _reference(state, w1, b1, w2, b2, w3, b3, jnp.bfloat16)
    assert probs.shape == (batch, action_size)
    assert bool(jnp.allclose(jnp.sum(probs, axis=-1), 1.0, atol=1e-4))
    assert bool(jnp.allclose(probs, ref, atol=1e-4, rtol=1e-3))

    print("KERNEL_OK")
</pallas_src>

<mosaic_0001>
module attributes {stable_mosaic.version = 11 : i64} {
  func.func @_actor_kernel(%arg0: i32, %arg1: memref<16x32xbf16, #tpu.memory_space<vmem>>, %arg2: memref<32x128xbf16, #tpu.memory_space<vmem>>, %arg3: memref<1x128xf32, #tpu.memory_space<vmem>>, %arg4: memref<128x256xbf16, #tpu.memory_space<vmem>>, %arg5: memref<1x256xf32, #tpu.memory_space<vmem>>, %arg6: memref<256x128xbf16, #tpu.memory_space<vmem>>, %arg7: memref<1x128xf32, #tpu.memory_space<vmem>>, %arg8: memref<16x128xf32, #tpu.memory_space<vmem>>) attributes {dimension_semantics = [#tpu.dimension_semantics<parallel>], iteration_bounds = array<i64: 1>, scalar_prefetch = 0 : i64, scratch_operands = 0 : i64, tpu.core_type = #tpu.core_type<tc>, window_params = [{transform_indices = @transform_0, window_bounds = array<i64: 16, 32>}, {pipeline_mode = #tpu.pipeline_mode<synchronous>, transform_indices = @transform_1, window_bounds = array<i64: 32, 128>}, {pipeline_mode = #tpu.pipeline_mode<synchronous>, transform_indices = @transform_2, window_bounds = array<i64: 1, 128>}, {pipeline_mode = #tpu.pipeline_mode<synchronous>, transform_indices = @transform_3, window_bounds = array<i64: 128, 256>}, {pipeline_mode = #tpu.pipeline_mode<synchronous>, transform_indices = @transform_4, window_bounds = array<i64: 1, 256>}, {pipeline_mode = #tpu.pipeline_mode<synchronous>, transform_indices = @transform_5, window_bounds = array<i64: 256, 128>}, {pipeline_mode = #tpu.pipeline_mode<synchronous>, transform_indices = @transform_6, window_bounds = array<i64: 1, 128>}, {transform_indices = @transform_7, window_bounds = array<i64: 16, 128>}]} {
    %c0 = arith.constant 0 : index
    %c0_0 = arith.constant 0 : index
    %0 = vector.load %arg1[%c0, %c0_0] : memref<16x32xbf16, #tpu.memory_space<vmem>>, vector<16x32xbf16>
    %c0_1 = arith.constant 0 : index
    %c0_2 = arith.constant 0 : index
    %1 = vector.load %arg2[%c0_1, %c0_2] : memref<32x128xbf16, #tpu.memory_space<vmem>>, vector<32x128xbf16>
    %cst = arith.constant dense<0.000000e+00> : vector<16x128xf32>
    %2 = tpu.matmul %0, %1, %cst {dimension_numbers = #tpu.dot_dimension_numbers<[1], [0], [0], [1], [0, 0, 1, 1], [], []>} : vector<16x32xbf16>, vector<32x128xbf16>, vector<16x128xf32> -> vector<16x128xf32>
    %c0_3 = arith.constant 0 : index
    %c0_4 = arith.constant 0 : index
    %3 = vector.load %arg3[%c0_3, %c0_4] : memref<1x128xf32, #tpu.memory_space<vmem>>, vector<1x128xf32>
    %4 = vector.broadcast %3 : vector<1x128xf32> to vector<16x128xf32>
    %5 = arith.addf %2, %4 : vector<16x128xf32>
    %cst_5 = arith.constant 0.000000e+00 : f32
    %6 = vector.broadcast %cst_5 : f32 to vector<16x128xf32>
    %7 = arith.maximumf %5, %6 : vector<16x128xf32>
    %8 = arith.truncf %7 : vector<16x128xf32> to vector<16x128xbf16>
    %c0_6 = arith.constant 0 : index
    %c0_7 = arith.constant 0 : index
    %9 = vector.load %arg4[%c0_6, %c0_7] : memref<128x256xbf16, #tpu.memory_space<vmem>>, vector<128x256xbf16>
    %cst_8 = arith.constant dense<0.000000e+00> : vector<16x256xf32>
    %10 = tpu.matmul %8, %9, %cst_8 {dimension_numbers = #tpu.dot_dimension_numbers<[1], [0], [0], [1], [0, 0, 1, 1], [], []>} : vector<16x128xbf16>, vector<128x256xbf16>, vector<16x256xf32> -> vector<16x256xf32>
    %c0_9 = arith.constant 0 : index
    %c0_10 = arith.constant 0 : index
    %11 = vector.load %arg5[%c0_9, %c0_10] : memref<1x256xf32, #tpu.memory_space<vmem>>, vector<1x256xf32>
    %12 = vector.broadcast %11 : vector<1x256xf32> to vector<16x256xf32>
    %13 = arith.addf %10, %12 : vector<16x256xf32>
    %cst_11 = arith.constant 0.000000e+00 : f32
    %14 = vector.broadcast %cst_11 : f32 to vector<16x256xf32>
    %15 = arith.maximumf %13, %14 : vector<16x256xf32>
    %16 = arith.truncf %15 : vector<16x256xf32> to vector<16x256xbf16>
    %c0_12 = arith.constant 0 : index
    %c0_13 = arith.constant 0 : index
    %17 = vector.load %arg6[%c0_12, %c0_13] : memref<256x128xbf16, #tpu.memory_space<vmem>>, vector<256x128xbf16>
    %cst_14 = arith.constant dense<0.000000e+00> : vector<16x128xf32>
    %18 = tpu.matmul %16, %17, %cst_14 {dimension_numbers = #tpu.dot_dimension_numbers<[1], [0], [0], [1], [0, 0, 1, 1], [], []>} : vector<16x256xbf16>, vector<256x128xbf16>, vector<16x128xf32> -> vector<16x128xf32>
    %c0_15 = arith.constant 0 : index
    %c0_16 = arith.constant 0 : index
    %19 = vector.load %arg7[%c0_15, %c0_16] : memref<1x128xf32, #tpu.memory_space<vmem>>, vector<1x128xf32>
    %20 = vector.broadcast %19 : vector<1x128xf32> to vector<16x128xf32>
    %21 = arith.addf %18, %20 : vector<16x128xf32>
    %cst_17 = arith.constant dense<0xFF800000> : vector<16xf32>
    %22 = vector.multi_reduction <maximumf>, %21, %cst_17 [1] : vector<16x128xf32> to vector<16xf32>
    %23 = vector.shape_cast %22 : vector<16xf32> to vector<16x1xf32>
    %24 = vector.broadcast %23 : vector<16x1xf32> to vector<16x128xf32>
    %25 = arith.subf %21, %24 : vector<16x128xf32>
    %26 = math.exp %25 : vector<16x128xf32>
    %cst_18 = arith.constant dense<0.000000e+00> : vector<16xf32>
    %27 = vector.multi_reduction <add>, %26, %cst_18 [1] : vector<16x128xf32> to vector<16xf32>
    %28 = vector.shape_cast %27 : vector<16xf32> to vector<16x1xf32>
    %29 = tpu.reciprocal %28 : vector<16x1xf32> -> vector<16x1xf32>
    %30 = vector.broadcast %29 : vector<16x1xf32> to vector<16x128xf32>
    %31 = arith.mulf %26, %30 : vector<16x128xf32>
    %c0_19 = arith.constant 0 : index
    %c0_20 = arith.constant 0 : index
    %32 = vector.load %arg8[%c0_19, %c0_20] : memref<16x128xf32, #tpu.memory_space<vmem>>, vector<16x128xf32>
    tpu.vector_store %arg8[%c0_19, %c0_20], %31 {strides = array<i32>} : memref<16x128xf32, #tpu.memory_space<vmem>>, vector<16x128xf32>,
    return
  }
  func.func @transform_0(%arg0: i32) -> (i32, i32) {
    %c0_i32 = arith.constant 0 : i32
    %c0_i32_0 = arith.constant 0 : i32
    return %arg0, %c0_i32 : i32, i32
  }
  func.func @transform_1(%arg0: i32) -> (i32, i32) {
    %c0_i32 = arith.constant 0 : i32
    %c0_i32_0 = arith.constant 0 : i32
    %c0_i32_1 = arith.constant 0 : i32
    return %c0_i32, %c0_i32_0 : i32, i32
  }
  func.func @transform_2(%arg0: i32) -> (i32, i32) {
    %c0_i32 = arith.constant 0 : i32
    %c0_i32_0 = arith.constant 0 : i32
    %c0_i32_1 = arith.constant 0 : i32
    return %c0_i32, %c0_i32_0 : i32, i32
  }
  func.func @transform_3(%arg0: i32) -> (i32, i32) {
    %c0_i32 = arith.constant 0 : i32
    %c0_i32_0 = arith.constant 0 : i32
    %c0_i32_1 = arith.constant 0 : i32
    return %c0_i32, %c0_i32_0 : i32, i32
  }
  func.func @transform_4(%arg0: i32) -> (i32, i32) {
    %c0_i32 = arith.constant 0 : i32
    %c0_i32_0 = arith.constant 0 : i32
    %c0_i32_1 = arith.constant 0 : i32
    return %c0_i32, %c0_i32_0 : i32, i32
  }
  func.func @transform_5(%arg0: i32) -> (i32, i32) {
    %c0_i32 = arith.constant 0 : i32
    %c0_i32_0 = arith.constant 0 : i32
    %c0_i32_1 = arith.constant 0 : i32
    return %c0_i32, %c0_i32_0 : i32, i32
  }
  func.func @transform_6(%arg0: i32) -> (i32, i32) {
    %c0_i32 = arith.constant 0 : i32
    %c0_i32_0 = arith.constant 0 : i32
    %c0_i32_1 = arith.constant 0 : i32
    return %c0_i32, %c0_i32_0 : i32, i32
  }
  func.func @transform_7(%arg0: i32) -> (i32, i32) {
    %c0_i32 = arith.constant 0 : i32
    %c0_i32_0 = arith.constant 0 : i32
    return %arg0, %c0_i32 : i32, i32
  }
}

</mosaic_0001>

<llo_original>
// kernel: actor_forward.1
$region0: #{actor_forward.1}
  #allocation0 [shape = 'u32[]', space=smem, size = 0x4, offset = 0x4, fixed_abs, tag = 'smem constant byte address 0x4 - core index']
  #allocation1 [shape = 'u32[72,128]{1,0:T(1,128)}', space=vmem, size = 0x9000, scoped, tag = 'internal scratch']
  %s0 = inlined_call_operand.vmem [shape: bf16[16,32], index: 0, kind: input, shape index: {}]
  %s1 = inlined_call_operand.vmem [shape: bf16[32,128], index: 1, kind: input, shape index: {}]
  %s2 = inlined_call_operand.vmem [shape: f32[1,128], index: 2, kind: input, shape index: {}]
  %s3 = inlined_call_operand.hbm [shape: bf16[128,256], index: 3, kind: input, shape index: {}]
  %s4 = inlined_call_operand.vmem [shape: f32[1,256], index: 4, kind: input, shape index: {}]
  %s5 = inlined_call_operand.hbm [shape: bf16[256,128], index: 5, kind: input, shape index: {}]
  %s6 = inlined_call_operand.vmem [shape: f32[1,128], index: 6, kind: input, shape index: {}]
  %s7 = inlined_call_operand.vmem [shape: f32[16,128], index: 7, kind: output, shape index: {}]
  %s8 = sld [smem:[#allocation0]]
  $region46: #{actor_forward.1} parent=0
    _
  %s10 = ssub.s32 1, %s8
  %s11 = scalar_select 0, %s10, %s8
  $region1: #{actor_forward.1} parent=0
    #allocation2 [shape = 'u8[65536]{0}', space=vmem, size = 0x10000, scoped, tag = 'input window, operand 3, single buffered']
    #allocation3 [shape = 's32[1]{0}', space=sflag, size = 0x4, scoped, tag = 'scoped memory for actor_forward.1']
    #allocation4 [shape = 'u8[65536]{0}', space=vmem, size = 0x10000, scoped, tag = 'input window, operand 5, single buffered']
    #allocation5 [shape = 's32[1]{0}', space=sflag, size = 0x4, scoped, tag = 'scoped memory for actor_forward.1']
    %12 = vsyncpa [#allocation3], 0
    %13 = vsyncpa [#allocation5], 0
    // Predicated region
    $region2: #{actor_forward.1} parent=1 // pred_check
      _
    $region3: #{actor_forward.1} parent=1 // pred_check_branch
      %15 = sbr.rel (0) target = $region5
    $region4: #{actor_forward.1} parent=1 // pred_region
      _
    $region5: #{actor_forward.1} parent=1 // pred_fallthru
      _
    // Predicated region
    $region6: #{actor_forward.1} parent=1 // pred_check
      _
    $region7: #{actor_forward.1} parent=1 // pred_check_branch
      %17 = sbr.rel (0) target = $region9
    $region8: #{actor_forward.1} parent=1 // pred_region
      _
    $region9: #{actor_forward.1} parent=1 // pred_fallthru
      _
    // Predicated region
    $region10: #{actor_forward.1} parent=1 // pred_check
      _
    $region11: #{actor_forward.1} parent=1 // pred_check_branch
      %19 = sbr.rel (0) target = $region13
    $region12: #{actor_forward.1} parent=1 // pred_region
      _
    $region13: #{actor_forward.1} parent=1 // pred_fallthru
      _
    // Predicated region
    $region14: #{actor_forward.1} parent=1 // pred_check
      _
    $region15: #{actor_forward.1} parent=1 // pred_check_branch
      %21 = sbr.rel (0) target = $region17
    $region16: #{actor_forward.1} parent=1 // pred_region
      %23 = vsyncadd [#allocation3], 0
      %s24 = sshll.u32 %s3, 4
      %s25 = int_to_ptr.hbm [resolvable:$true] %s24
      %s26 = sshll.u32 [#allocation2], 4
      %s27 = int_to_ptr.vmem [resolvable:$true] %s26
      %32 = dma.hbm_to_vmem [thread:$0]  %s25, 2048, %s27, [#allocation3], 128, 128, 8
    $region17: #{actor_forward.1} parent=1 // pred_fallthru
      _
    // Predicated region
    $region18: #{actor_forward.1} parent=1 // pred_check
      _
    $region19: #{actor_forward.1} parent=1 // pred_check_branch
      %34 = sbr.rel (0) target = $region21
    $region20: #{actor_forward.1} parent=1 // pred_region
      _
    $region21: #{actor_forward.1} parent=1 // pred_fallthru
      _
    // Predicated region
    $region22: #{actor_forward.1} parent=1 // pred_check
      _
    $region23: #{actor_forward.1} parent=1 // pred_check_branch
      %36 = sbr.rel (0) target = $region25
    $region24: #{actor_forward.1} parent=1 // pred_region
      %38 = vsyncadd [#allocation5], 0
      %s39 = sshll.u32 %s5, 4
      %s40 = int_to_ptr.hbm [resolvable:$true] %s39
      %s41 = sshll.u32 [#allocation4], 4
      %s42 = int_to_ptr.vmem [resolvable:$true] %s41
      %47 = dma.hbm_to_vmem [thread:$0]  %s40, 2048, %s42, [#allocation5], 64, 64, 4
    $region25: #{actor_forward.1} parent=1 // pred_fallthru
      _
    // Predicated region
    $region26: #{actor_forward.1} parent=1 // pred_check
      _
    $region27: #{actor_forward.1} parent=1 // pred_check_branch
      %49 = sbr.rel (0) target = $region29
    $region28: #{actor_forward.1} parent=1 // pred_region
      _
    $region29: #{actor_forward.1} parent=1 // pred_fallthru
      _
    // Predicated region
    $region30: #{actor_forward.1} parent=1 // pred_check
      _
    $region31: #{actor_forward.1} parent=1 // pred_check_branch
      %51 = sbr.rel (0) target = $region33
    $region32: #{actor_forward.1} parent=1 // pred_region
      %53 = dma.done [#allocation3], 2048
    $region33: #{actor_forward.1} parent=1 // pred_fallthru
      _
    // Predicated region
    $region34: #{actor_forward.1} parent=1 // pred_check
      _
    $region35: #{actor_forward.1} parent=1 // pred_check_branch
      %55 = sbr.rel (0) target = $region37
    $region36: #{actor_forward.1} parent=1 // pred_region
      %57 = dma.done [#allocation5], 2048
    $region37: #{actor_forward.1} parent=1 // pred_fallthru
      _
    %v59 = vld [vmem:[%s0] sm:$0xf]
    %v60 = vld [vmem:[%s0 + $0x4] sm:$0xf]
    %v61 = vld [vmem:[%s1] sm:$0xf]
    %v62 = vld [vmem:[%s1 + $0x4] sm:$0xf]
    %v63 = vld [vmem:[%s1 + $0x8] sm:$0xf]
    %v64 = vld [vmem:[%s1 + $0xc] sm:$0xf]
    %v65 = vld [vmem:[%s2] sm:$0x1]
    %v67 = vperm.slane %v65, 0
    %v71 = vunpack.c.l.b16 %v59
    %v72 = vunpack.c.l.b16 %v60
    %v73 = vpack.c.b16 %v72, %v71
    %v78 = vunpack.c.l.b16 %v61
    %v79 = vunpack.c.l.b16 %v62
    %v80 = vunpack.c.l.b16 %v63
    %v81 = vunpack.c.l.b16 %v64
    %v82 = vpack.c.b16 %v79, %v78
    %v83 = vpack.c.b16 %v81, %v80
    %vm86 = vcmask 261120
    %v88 = vsel %vm86, %v73, 0
    %90 = vmatpush.bf16.msra.mxu0 0
    %91 = vmatpush.bf16.msra.mxu0 0
    %92 = vmatpush.bf16.msra.mxu0 0
    %93 = vmatpush.bf16.msra.mxu0 0
    %94 = vmatpush.bf16.msra.mxu0 0
    %95 = vmatpush.bf16.msra.mxu0 0
    %96 = vmatpush.bf16.msra.mxu0 %v83
    %97 = vmatpush.bf16.msra.mxu0 %v82
    %98 = vmatmul.bf16.gmra.mxu0 %v88
    %v99 = vpop.f32.mrf.mxu0
    %v100 = vadd.f32 %v67, %v99
    %v101 = vpop.f32.mrf.mxu0
    %v102 = vadd.f32 %v67, %v101
    %103 = vdwg.mxu0
    %v104 = vmax.f32 %v100, 0.0
    %v105 = vmax.f32 %v102, 0.0
    %v106 = vpack.c.bf16 %v105, %v104
    %v107 = vld [vmem:[#allocation2] sm:$0xff]
    %v108 = vld [vmem:[#allocation2 + $0x8] sm:$0xff]
    %v109 = vld [vmem:[#allocation2 + $0x10] sm:$0xff]
    %v110 = vld [vmem:[#allocation2 + $0x18] sm:$0xff]
    %v111 = vld [vmem:[#allocation2 + $0x20] sm:$0xff]
    %v112 = vld [vmem:[#allocation2 + $0x28] sm:$0xff]
    %v113 = vld [vmem:[#allocation2 + $0x30] sm:$0xff]
    %v114 = vld [vmem:[#allocation2 + $0x38] sm:$0xff]
    %v115 = vld [vmem:[#allocation2 + $0x40] sm:$0xff]
    %v116 = vld [vmem:[#allocation2 + $0x48] sm:$0xff]
    %v117 = vld [vmem:[#allocation2 + $0x50] sm:$0xff]
    %v118 = vld [vmem:[#allocation2 + $0x58] sm:$0xff]
    %v119 = vld [vmem:[#allocation2 + $0x60] sm:$0xff]
    %v120 = vld [vmem:[#allocation2 + $0x68] sm:$0xff]
    %v121 = vld [vmem:[#allocation2 + $0x70] sm:$0xff]
    %v122 = vld [vmem:[#allocation2 + $0x78] sm:$0xff]
    %v123 = vld [vmem:[%s4] sm:$0x3]
    %v125 = vperm.slane %v123, 0
    %v126 = vperm.slane %v123, 1
    %v145 = vunpack.c.l.b16 %v107
    %v146 = vunpack.c.h.b16 %v107
    %v147 = vunpack.c.l.b16 %v108
    %v148 = vunpack.c.h.b16 %v108
    %v149 = vunpack.c.l.b16 %v109
    %v150 = vunpack.c.h.b16 %v109
    %v151 = vunpack.c.l.b16 %v110
    %v152 = vunpack.c.h.b16 %v110
    %v153 = vunpack.c.l.b16 %v111
    %v154 = vunpack.c.h.b16 %v111
    %v155 = vunpack.c.l.b16 %v112
    %v156 = vunpack.c.h.b16 %v112
    %v157 = vunpack.c.l.b16 %v113
    %v158 = vunpack.c.h.b16 %v113
    %v159 = vunpack.c.l.b16 %v114
    %v160 = vunpack.c.h.b16 %v114
    %v161 = vunpack.c.l.b16 %v115
    %v162 = vunpack.c.h.b16 %v115
    %v163 = vunpack.c.l.b16 %v116
    %v164 = vunpack.c.h.b16 %v116
    %v165 = vunpack.c.l.b16 %v117
    %v166 = vunpack.c.h.b16 %v117
    %v167 = vunpack.c.l.b16 %v118
    %v168 = vunpack.c.h.b16 %v118
    %v169 = vunpack.c.l.b16 %v119
    %v170 = vunpack.c.h.b16 %v119
    %v171 = vunpack.c.l.b16 %v120
    %v172 = vunpack.c.h.b16 %v120
    %v173 = vunpack.c.l.b16 %v121
    %v174 = vunpack.c.h.b16 %v121
    %v175 = vunpack.c.l.b16 %v122
    %v176 = vunpack.c.h.b16 %v122
    %v177 = vpack.c.b16 %v147, %v145
    %v178 = vpack.c.b16 %v148, %v146
    %v179 = vpack.c.b16 %v151, %v149
    %v180 = vpack.c.b16 %v152, %v150
    %v181 = vpack.c.b16 %v155, %v153
    %v182 = vpack.c.b16 %v156, %v154
    %v183 = vpack.c.b16 %v159, %v157
    %v184 = vpack.c.b16 %v160, %v158
    %v185 = vpack.c.b16 %v163, %v161
    %v186 = vpack.c.b16 %v164, %v162
    %v187 = vpack.c.b16 %v167, %v165
    %v188 = vpack.c.b16 %v168, %v166
    %v189 = vpack.c.b16 %v171, %v169
    %v190 = vpack.c.b16 %v172, %v170
    %v191 = vpack.c.b16 %v175, %v173
    %v192 = vpack.c.b16 %v176, %v174
    %209 = vmatpush.bf16.msra.mxu0 %v191
    %210 = vmatpush.bf16.msra.mxu0 %v189
    %211 = vmatpush.bf16.msra.mxu0 %v187
    %212 = vmatpush.bf16.msra.mxu0 %v185
    %213 = vmatpush.bf16.msra.mxu0 %v183
    %214 = vmatpush.bf16.msra.mxu0 %v181
    %215 = vmatpush.bf16.msra.mxu0 %v179
    %216 = vmatpush.bf16.msra.mxu0 %v177
    %217 = vmatmul.bf16.gmra.mxu0 %v106
    %v218 = vpop.f32.mrf.mxu0
    %v219 = vadd.f32 %v125, %v218
    %v220 = vpop.f32.mrf.mxu0
    %v221 = vadd.f32 %v125, %v220
    %222 = vdwg.mxu0
    %223 = vmatpush.bf16.msra.mxu0 %v192
    %224 = vmatpush.bf16.msra.mxu0 %v190
    %225 = vmatpush.bf16.msra.mxu0 %v188
    %226 = vmatpush.bf16.msra.mxu0 %v186
    %227 = vmatpush.bf16.msra.mxu0 %v184
    %228 = vmatpush.bf16.msra.mxu0 %v182
    %229 = vmatpush.bf16.msra.mxu0 %v180
    %230 = vmatpush.bf16.msra.mxu0 %v178
    %231 = vmatmul.bf16.gmra.mxu0 %v106
    %v232 = vpop.f32.mrf.mxu0
    %v233 = vadd.f32 %v126, %v232
    %v234 = vpop.f32.mrf.mxu0
    %v235 = vadd.f32 %v126, %v234
    %236 = vdwg.mxu0
    %v237 = vmax.f32 %v219, 0.0
    %v238 = vmax.f32 %v233, 0.0
    %v239 = vmax.f32 %v221, 0.0
    %v240 = vmax.f32 %v235, 0.0
    %v241 = vpack.c.bf16 %v239, %v237
    %v242 = vpack.c.bf16 %v240, %v238
    %v243 = vld [vmem:[#allocation4] sm:$0xf]
    %v244 = vld [vmem:[#allocation4 + $0x4] sm:$0xf]
    %v245 = vld [vmem:[#allocation4 + $0x8] sm:$0xf]
    %v246 = vld [vmem:[#allocation4 + $0xc] sm:$0xf]
    %v247 = vld [vmem:[#allocation4 + $0x10] sm:$0xf]
    %v248 = vld [vmem:[#allocation4 + $0x14] sm:$0xf]
    %v249 = vld [vmem:[#allocation4 + $0x18] sm:$0xf]
    %v250 = vld [vmem:[#allocation4 + $0x1c] sm:$0xf]
    %v251 = vld [vmem:[#allocation4 + $0x20] sm:$0xf]
    %v252 = vld [vmem:[#allocation4 + $0x24] sm:$0xf]
    %v253 = vld [vmem:[#allocation4 + $0x28] sm:$0xf]
    %v254 = vld [vmem:[#allocation4 + $0x2c] sm:$0xf]
    %v255 = vld [vmem:[#allocation4 + $0x30] sm:$0xf]
    %v256 = vld [vmem:[#allocation4 + $0x34] sm:$0xf]
    %v257 = vld [vmem:[#allocation4 + $0x38] sm:$0xf]
    %v258 = vld [vmem:[#allocation4 + $0x3c] sm:$0xf]
    %v259 = vld [vmem:[#allocation4 + $0x40] sm:$0xf]
    %v260 = vld [vmem:[#allocation4 + $0x44] sm:$0xf]
    %v261 = vld [vmem:[#allocation4 + $0x48] sm:$0xf]
    %v262 = vld [vmem:[#allocation4 + $0x4c] sm:$0xf]
    %v263 = vld [vmem:[#allocation4 + $0x50] sm:$0xf]
    %v264 = vld [vmem:[#allocation4 + $0x54] sm:$0xf]
    %v265 = vld [vmem:[#allocation4 + $0x58] sm:$0xf]
    %v266 = vld [vmem:[#allocation4 + $0x5c] sm:$0xf]
    %v267 = vld [vmem:[#allocation4 + $0x60] sm:$0xf]
    %v268 = vld [vmem:[#allocation4 + $0x64] sm:$0xf]
    %v269 = vld [vmem:[#allocation4 + $0x68] sm:$0xf]
    %v270 = vld [vmem:[#allocation4 + $0x6c] sm:$0xf]
    %v271 = vld [vmem:[#allocation4 + $0x70] sm:$0xf]
    %v272 = vld [vmem:[#allocation4 + $0x74] sm:$0xf]
    %v273 = vld [vmem:[#allocation4 + $0x78] sm:$0xf]
    %v274 = vld [vmem:[#allocation4 + $0x7c] sm:$0xf]
    %v275 = vld [vmem:[%s6] sm:$0x1]
    %v277 = vperm.slane %v275, 0
    %v311 = vunpack.c.l.b16 %v243
    %v312 = vunpack.c.l.b16 %v244
    %v313 = vunpack.c.l.b16 %v245
    %v314 = vunpack.c.l.b16 %v246
    %v315 = vunpack.c.l.b16 %v247
    %v316 = vunpack.c.l.b16 %v248
    %v317 = vunpack.c.l.b16 %v249
    %v318 = vunpack.c.l.b16 %v250
    %v319 = vunpack.c.l.b16 %v251
    %v320 = vunpack.c.l.b16 %v252
    %v321 = vunpack.c.l.b16 %v253
    %v322 = vunpack.c.l.b16 %v254
    %v323 = vunpack.c.l.b16 %v255
    %v324 = vunpack.c.l.b16 %v256
    %v325 = vunpack.c.l.b16 %v257
    %v326 = vunpack.c.l.b16 %v258
    %v327 = vunpack.c.l.b16 %v259
    %v328 = vunpack.c.l.b16 %v260
    %v329 = vunpack.c.l.b16 %v261
    %v330 = vunpack.c.l.b16 %v262
    %v331 = vunpack.c.l.b16 %v263
    %v332 = vunpack.c.l.b16 %v264
    %v333 = vunpack.c.l.b16 %v265
    %v334 = vunpack.c.l.b16 %v266
    %v335 = vunpack.c.l.b16 %v267
    %v336 = vunpack.c.l.b16 %v268
    %v337 = vunpack.c.l.b16 %v269
    %v338 = vunpack.c.l.b16 %v270
    %v339 = vunpack.c.l.b16 %v271
    %v340 = vunpack.c.l.b16 %v272
    %v341 = vunpack.c.l.b16 %v273
    %v342 = vunpack.c.l.b16 %v274
    %v343 = vpack.c.b16 %v312, %v311
    %v344 = vpack.c.b16 %v314, %v313
    %v345 = vpack.c.b16 %v316, %v315
    %v346 = vpack.c.b16 %v318, %v317
    %v347 = vpack.c.b16 %v320, %v319
    %v348 = vpack.c.b16 %v322, %v321
    %v349 = vpack.c.b16 %v324, %v323
    %v350 = vpack.c.b16 %v326, %v325
    %v351 = vpack.c.b16 %v328, %v327
    %v352 = vpack.c.b16 %v330, %v329
    %v353 = vpack.c.b16 %v332, %v331
    %v354 = vpack.c.b16 %v334, %v333
    %v355 = vpack.c.b16 %v336, %v335
    %v356 = vpack.c.b16 %v338, %v337
    %v357 = vpack.c.b16 %v340, %v339
    %v358 = vpack.c.b16 %v342, %v341
    %375 = vmatpush.bf16.msra.mxu0 %v350
    %376 = vmatpush.bf16.msra.mxu0 %v349
    %377 = vmatpush.bf16.msra.mxu0 %v348
    %378 = vmatpush.bf16.msra.mxu0 %v347
    %379 = vmatpush.bf16.msra.mxu0 %v346
    %380 = vmatpush.bf16.msra.mxu0 %v345
    %381 = vmatpush.bf16.msra.mxu0 %v344
    %382 = vmatpush.bf16.msra.mxu0 %v343
    %383 = vmatmul.bf16.gmra.mxu0 %v241
    %v384 = vpop.f32.mrf.mxu0
    %v385 = vadd.f32 %v277, %v384
    %v386 = vpop.f32.mrf.mxu0
    %v387 = vadd.f32 %v277, %v386
    %388 = vdwg.mxu0
    %389 = vmatpush.bf16.msra.mxu0 %v358
    %390 = vmatpush.bf16.msra.mxu0 %v357
    %391 = vmatpush.bf16.msra.mxu0 %v356
    %392 = vmatpush.bf16.msra.mxu0 %v355
    %393 = vmatpush.bf16.msra.mxu0 %v354
    %394 = vmatpush.bf16.msra.mxu0 %v353
    %395 = vmatpush.bf16.msra.mxu0 %v352
    %396 = vmatpush.bf16.msra.mxu0 %v351
    %397 = vmatmul.bf16.gmra.mxu0 %v242
    %v398 = vpop.f32.mrf.mxu0
    %v399 = vadd.f32 %v385, %v398
    %v400 = vpop.f32.mrf.mxu0
    %v401 = vadd.f32 %v387, %v400
    %402 = vdwg.mxu0
    %403 = vmax.xlane.f32.xlu0 %v399
    %v404 = vpop.xlane.xlu0 %403
    %405 = vmax.xlane.f32.xlu0 %v401
    %v406 = vpop.xlane.xlu0 %405
    %v407 = vsub.f32 %v399, %v404
    %v408 = vsub.f32 %v401, %v406
    %v409 = vmul.f32 %v407, 1.442695
    %v410 = vpow.pop %v409
    %v411 = vmul.f32 %v408, 1.442695
    %v412 = vpow.pop %v411
    %413 = vadd.xlane.f32.xlu0 %v410
    %v414 = vpop.xlane.xlu0 %413
    %415 = vadd.xlane.f32.xlu0 %v412
    %v416 = vpop.xlane.xlu0 %415
    %v417 = vrcp.pop %v414
    %v418 = vmul.f32 %v414, %v417
    %v419 = vsub.f32 1.0, %v418
    %v420 = vmul.f32 %v417, %v419
    %v421 = vadd.f32 %v417, %v420
    %vm422 = vweird.f32 %v414
    %vm423 = vweird.f32 %v417
    %vm424 = vmor %vm422, %vm423
    %v425 = vsel %vm424, %v417, %v421
    %v426 = vand.u32 2147483647, %v414
    %vm427 = vcmp.eq.f32.partialorder %v426, 8.507059e+37
    %v428 = vand.u32 %v414, 2147483648
    %v429 = vor.u32 1.1754944e-38, %v428
    %v430 = vsel %vm427, %v429, %v425
    %v431 = vrcp.pop %v416
    %v432 = vmul.f32 %v416, %v431
    %v433 = vsub.f32 1.0, %v432
    %v434 = vmul.f32 %v431, %v433
    %v435 = vadd.f32 %v431, %v434
    %vm436 = vweird.f32 %v416
    %vm437 = vweird.f32 %v431
    %vm438 = vmor %vm436, %vm437
    %v439 = vsel %vm438, %v431, %v435
    %v440 = vand.u32 2147483647, %v416
    %vm441 = vcmp.eq.f32.partialorder %v440, 8.507059e+37
    %v442 = vand.u32 %v416, 2147483648
    %v443 = vor.u32 1.1754944e-38, %v442
    %v444 = vsel %vm441, %v443, %v439
    %v445 = vmul.f32 %v410, %v430
    %v446 = vmul.f32 %v412, %v444
    %447 = vst [vmem:[%s7] sm:$0xff] %v445
    %448 = vst [vmem:[%s7 + $0x8] sm:$0xff] %v446
    // Predicated region
    $region38: #{actor_forward.1} parent=1 // pred_check
      _
    $region39: #{actor_forward.1} parent=1 // pred_check_branch
      %450 = sbr.rel (0) target = $region41
    $region40: #{actor_forward.1} parent=1 // pred_region
      _
    $region41: #{actor_forward.1} parent=1 // pred_fallthru
      _
    // Predicated region
    $region42: #{actor_forward.1} parent=1 // pred_check
      _
    $region43: #{actor_forward.1} parent=1 // pred_check_branch
      %452 = sbr.rel (0) target = $region45
    $region44: #{actor_forward.1} parent=1 // pred_region
      _
    $region45: #{actor_forward.1} parent=1 // pred_fallthru
      _
    %453 = vsyncpa [#allocation3], 1
    %454 = vsyncpa [#allocation5], 1

</llo_original>
